<compile_context>
chip_gen: v7x
topology: tpu7x:2x2x1
jax: 0.10.0
libtpu: 0.0.40
codegen_flags: <defaults>
</compile_context>

<pallas_src>
import numpy as np
import jax
import jax.numpy as jnp
from jax import lax
from jax.experimental import pallas as pl
from jax.experimental.pallas import tpu as pltpu

C_IN = 4
C_OUT = 4
H = 16
W = 16
KH = KW = 3
HS = H // 2                  # 8   super-rows (2 image rows per super-row)
LANES_IN = 2 * W * C_IN      # 128 one input  super-row, (row-in-pair, w, c_in) merged
LANES_OUT = 2 * W * C_OUT    # 128 one output super-row, (row-in-pair, w, c_out) merged
K_DIM = 2 * LANES_IN         # 256 im2row K: [row 2s | row 2s+1 | row 2s+2 | row 2s-1]

# (output-row-in-pair b, dy) -> lane base of input row h_in = 2s + b + dy - 1
# inside the 256-wide im2row layout above.
_K_BASE = {(0, 0): 192, (0, 1): 0,  (0, 2): 64,
           (1, 0): 0,   (1, 1): 64, (1, 2): 128}


def _conv_superrow_kernel(t_ref, x_ref, w_ref, b_ref, o_ref, lhs_ref):
    """One grid step = bt whole images presented as lane-dense super-rows.

    t_ref   : (1, 1)       SMEM scalar time
    x_ref   : (bt*8, 128)  bf16 input super-rows (rows 2s|2s+1, (w,c_in) merged)
    w_ref   : (256, 128)   bf16 block-Toeplitz conv weights (VMEM resident)
    b_ref   : (1, 128)     f32 bias tiled over (row-in-pair, w)
    o_ref   : (bt*8, 128)  f32 output super-rows
    lhs_ref : (bt*8, 256)  bf16 im2row scratch — fully rewritten every step
    """
    x = x_ref[...]                                        # bf16

    # Neighbour image rows via XLU sublane rotates (32-bit rolls on an f32
    # copy).  The srow masks kill the wrapped / cross-image rows and double as
    # the vertical 'same' zero padding — no scratch memset anywhere.
    xf = x.astype(jnp.float32)
    n_rows = xf.shape[0]
    nxt = pltpu.roll(xf, n_rows - 1, 0)                   # row g+1  (image row 2s+2)
    prv = pltpu.roll(xf, 1, 0)                            # row g-1  (image row 2s-1)
    srow = lax.broadcasted_iota(jnp.int32, xf.shape, 0) & (HS - 1)
    lane = lax.broadcasted_iota(jnp.int32, xf.shape, 1)
    nxt = jnp.where(srow == HS - 1, 0.0, nxt)             # row 2s+2 >= H -> zero pad
    prv = jnp.where(srow == 0, 0.0, prv)                  # row 2s-1 <  0 -> zero pad
    side = jnp.where(lane < W * C_IN, nxt, prv).astype(x.dtype)

    # im2row scratch: both stores are full-width, 128-lane aligned (unmasked).
    lhs_ref[:, 0:LANES_IN] = x                            # rows 2s | 2s+1
    lhs_ref[:, LANES_IN:K_DIM] = side                     # rows 2s+2 | 2s-1

    # Single fused MXU contraction per tile: (bt*8, 256) @ (256, 128), f32 acc.
    acc = jnp.dot(lhs_ref[...], w_ref[...], preferred_element_type=jnp.float32)

    # Epilogue: bias + (1 + t) time conditioning; lane-dense f32 store.
    o_ref[...] = ((acc + b_ref[...]) * (1.0 + t_ref[0, 0])).astype(o_ref.dtype)


def _build_rhs_toeplitz(w_oihw):
    """(C_OUT, C_IN, 3, 3) -> (256, 128) block-Toeplitz RHS for super-row conv.

    K rows   : [row 2s | row 2s+1 | row 2s+2 | row 2s-1], each (w, c_in) 64-wide.
    N columns: [out row 2s | out row 2s+1],               each (w, c_out) 64-wide.
    Horizontal 'same' padding lives in the band structure (entries with
    wi = wo+dx-1 outside [0, W) stay zero); vertical padding is done in-kernel.
    """
    w = np.asarray(jax.device_get(w_oihw), np.float32)    # (C_OUT, C_IN, 3, 3)
    rhs = np.zeros((K_DIM, LANES_OUT), np.float32)
    for brow in range(2):                                 # output row within the pair
        for dy in range(KH):
            base = _K_BASE[(brow, dy)]
            for dx in range(KW):
                blk = w[:, :, dy, dx].T                   # (C_IN, C_OUT)
                for wo in range(W):
                    wi = wo + dx - 1
                    if 0 <= wi < W:
                        rhs[base + wi * C_IN: base + (wi + 1) * C_IN,
                            brow * (W * C_OUT) + wo * C_OUT:
                            brow * (W * C_OUT) + (wo + 1) * C_OUT] = blk
    return jnp.asarray(rhs)


def prepare_model_params(w_oihw, b):
    """Hoisted weight prep: build the Toeplitz RHS / tiled bias once, reuse."""
    rhs = _build_rhs_toeplitz(w_oihw).astype(jnp.bfloat16)
    bias_row = jnp.tile(jnp.asarray(b, jnp.float32), 2 * W)[None, :]   # (1, 128)
    return rhs, bias_row


def _pick_tiles(n, cap=512):
    """As few batch tiles as possible (<= cap images each), but at least 2 when
    N >= 2 so v7x megacore 'parallel' sharding keeps both TensorCores busy."""
    if n <= 1:
        return 1, 1
    tiles = max(2, -(-n // cap))
    bt = -(-n // tiles)
    return bt, tiles


def _model_pallas_impl(t, x_nchw, rhs, bias_row):
    """Inner model: time-conditioned 3x3 'same' conv.  x_nchw: (N, C_IN, H, W)."""
    n = x_nchw.shape[0]

    # Layout glue (plain JAX): NCHW -> NHWC -> lane-dense super-rows
    # (N*8, 128); bf16 halves HBM->VMEM traffic and feeds the MXU at native
    # bf16 rate (accumulation stays f32 in-kernel).
    x_rows = (jnp.transpose(x_nchw, (0, 2, 3, 1))
              .reshape(n * HS, LANES_IN).astype(jnp.bfloat16))

    bt, tiles = _pick_tiles(n)
    n_pad = bt * tiles
    if n_pad != n:
        # TODO(synk): ragged last tile could be masked in-kernel instead of padded.
        x_rows = jnp.pad(x_rows, ((0, (n_pad - n) * HS), (0, 0)))

    t_arr = jnp.asarray(t, dtype=jnp.float32).reshape(1, 1)

    cost = pl.CostEstimate(
        flops=2 * n_pad * HS * K_DIM * LANES_OUT,
        transcendentals=0,
        bytes_accessed=(x_rows.size * 2 + n_pad * HS * LANES_OUT * 4
                        + rhs.size * 2 + bias_row.size * 4))

    out_rows = pl.pallas_call(
        _conv_superrow_kernel,
        out_shape=jax.ShapeDtypeStruct((n_pad * HS, LANES_OUT), jnp.float32),
        grid=(tiles,),
        in_specs=[
            pl.BlockSpec(memory_space=pltpu.MemorySpace.SMEM),            # t scalar
            pl.BlockSpec((bt * HS, LANES_IN), lambda i: (i, 0)),          # input super-rows
            pl.BlockSpec((K_DIM, LANES_OUT), lambda i: (0, 0)),           # Toeplitz W (resident)
            pl.BlockSpec((1, LANES_OUT), lambda i: (0, 0)),               # bias     (resident)
        ],
        out_specs=pl.BlockSpec((bt * HS, LANES_OUT), lambda i: (i, 0)),
        scratch_shapes=[pltpu.VMEM((bt * HS, K_DIM), jnp.bfloat16)],      # im2row scratch
        compiler_params=pltpu.CompilerParams(
            dimension_semantics=("parallel",)),                           # v7x: both TCs
        cost_estimate=cost,
    )(t_arr, x_rows, rhs, bias_row)

    # Super-rows -> NCHW (matches the PyTorch model's output layout pre-flatten).
    out = out_rows[: n * HS].reshape(n, H, W, C_OUT)
    return jnp.transpose(out, (0, 3, 1, 2))


_model_pallas = jax.jit(_model_pallas_impl)


def reshape_wrapper_forward(t, x, dims, rhs, bias_row):
    """Exact semantics of reshape_wrapper.forward."""
    if x.ndim == 2:
        x4 = x.reshape(-1, *dims)                          # x.view(-1, *dims)
        y = _model_pallas(t, x4, rhs, bias_row)            # (N, C, H, W)
        return y.reshape(y.shape[0], -1)                   # .flatten(start_dim=1)
    else:
        x4 = x.reshape(*dims)                              # x.view(*dims)
        y = _model_pallas(t, x4[None], rhs, bias_row)[0]   # unbatched model call
        return y.reshape(-1)                               # .flatten()


def _model_ref(t, x_nchw, w_oihw, b):
    """Pure-JAX f32 reference of the inner model (for verification)."""
    y = lax.conv_general_dilated(
        x_nchw.astype(jnp.float32), w_oihw.astype(jnp.float32),
        window_strides=(1, 1), padding="SAME",
        dimension_numbers=("NCHW", "OIHW", "NCHW"))
    return (y + b.reshape(1, -1, 1, 1)) * (1.0 + t)


if __name__ == "__main__":
    key = jax.random.PRNGKey(0)
    k1, k2, k3 = jax.random.split(key, 3)

    dims = (C_IN, H, W)          # reshape_wrapper's self.dims
    batch = 2
    t = jnp.float32(0.37)
    x = jax.random.normal(k1, (batch, C_IN * H * W), jnp.float32)

    # Deterministic synthetic parameters for the inner model (PyTorch OIHW layout).
    w_oihw = jax.random.normal(k2, (C_OUT, C_IN, KH, KW), jnp.float32) * 0.1
    b = jax.random.normal(k3, (C_OUT,), jnp.float32) * 0.1

    rhs, bias_row = prepare_model_params(w_oihw, b)        # hoisted weight prep

    # Batched (x.ndim == 2) branch.
    out = reshape_wrapper_forward(t, x, dims, rhs, bias_row)
    jax.block_until_ready(out)
    ref = _model_ref(t, x.reshape(-1, *dims), w_oihw, b).reshape(batch, -1)
    assert out.shape == (batch, C_IN * H * W)
    # bf16 inputs / weights with f32 accumulation -> relaxed tolerance vs f32 ref.
    assert jnp.allclose(out, ref, atol=5e-2, rtol=5e-2), "batched branch mismatch"

    # Unbatched (flat x) branch.
    out1 = reshape_wrapper_forward(t, x[0], dims, rhs, bias_row)
    jax.block_until_ready(out1)
    assert out1.shape == (C_IN * H * W,)
    assert jnp.allclose(out1, ref[0], atol=5e-2, rtol=5e-2), "unbatched branch mismatch"

    print("KERNEL_OK")
</pallas_src>

<mosaic_0001>
module attributes {stable_mosaic.version = 11 : i64} {
  func.func @_conv_superrow_kernel(%arg0: i32, %arg1: memref<1x1xf32, #tpu.memory_space<smem>>, %arg2: memref<8x128xbf16, #tpu.memory_space<vmem>>, %arg3: memref<256x128xbf16, #tpu.memory_space<vmem>>, %arg4: memref<1x128xf32, #tpu.memory_space<vmem>>, %arg5: memref<8x128xf32, #tpu.memory_space<vmem>>, %arg6: memref<8x256xbf16, #tpu.memory_space<vmem>>) attributes {dimension_semantics = [#tpu.dimension_semantics<parallel>], iteration_bounds = array<i64: 2>, scalar_prefetch = 0 : i64, scratch_operands = 1 : i64, tpu.core_type = #tpu.core_type<tc>, window_params = [{transform_indices = @transform_0, window_bounds = array<i64: 1, 1>}, {transform_indices = @transform_1, window_bounds = array<i64: 8, 128>}, {pipeline_mode = #tpu.pipeline_mode<synchronous>, transform_indices = @transform_2, window_bounds = array<i64: 256, 128>}, {pipeline_mode = #tpu.pipeline_mode<synchronous>, transform_indices = @transform_3, window_bounds = array<i64: 1, 128>}, {transform_indices = @transform_4, window_bounds = array<i64: 8, 128>}]} {
    %c0 = arith.constant 0 : index
    %c0_0 = arith.constant 0 : index
    %0 = vector.load %arg2[%c0, %c0_0] : memref<8x128xbf16, #tpu.memory_space<vmem>>, vector<8x128xbf16>
    %1 = arith.extf %0 : vector<8x128xbf16> to vector<8x128xf32>
    %c7_i32 = arith.constant 7 : i32
    %2 = tpu.dynamic_rotate %1 by %c7_i32 dim 0 : vector<8x128xf32>, i32 -> vector<8x128xf32>
    %c1_i32 = arith.constant 1 : i32
    %3 = tpu.dynamic_rotate %1 by %c1_i32 dim 0 : vector<8x128xf32>, i32 -> vector<8x128xf32>
    %4 = tpu.iota {dimensions = array<i32: 0>} : vector<8x128xi32>
    %c7_i32_1 = arith.constant 7 : i32
    %5 = vector.broadcast %c7_i32_1 : i32 to vector<8x128xi32>
    %6 = arith.andi %4, %5 : vector<8x128xi32>
    %7 = tpu.iota {dimensions = array<i32: 1>} : vector<8x128xi32>
    %c7_i32_2 = arith.constant 7 : i32
    %8 = vector.broadcast %c7_i32_2 : i32 to vector<8x128xi32>
    %9 = arith.cmpi eq, %6, %8 : vector<8x128xi32>
    %cst = arith.constant 0.000000e+00 : f32
    %10 = vector.broadcast %cst : f32 to vector<8x128xf32>
    %11 = arith.select %9, %10, %2 : vector<8x128xi1>, vector<8x128xf32>
    %c0_i32 = arith.constant 0 : i32
    %12 = vector.broadcast %c0_i32 : i32 to vector<8x128xi32>
    %13 = arith.cmpi eq, %6, %12 : vector<8x128xi32>
    %cst_3 = arith.constant 0.000000e+00 : f32
    %14 = vector.broadcast %cst_3 : f32 to vector<8x128xf32>
    %15 = arith.select %13, %14, %3 : vector<8x128xi1>, vector<8x128xf32>
    %c64_i32 = arith.constant 64 : i32
    %16 = vector.broadcast %c64_i32 : i32 to vector<8x128xi32>
    %17 = arith.cmpi slt, %7, %16 : vector<8x128xi32>
    %18 = arith.select %17, %11, %15 : vector<8x128xi1>, vector<8x128xf32>
    %19 = arith.truncf %18 : vector<8x128xf32> to vector<8x128xbf16>
    %c0_4 = arith.constant 0 : index
    %c0_5 = arith.constant 0 : index
    %20 = vector.load %arg6[%c0_4, %c0_5] : memref<8x256xbf16, #tpu.memory_space<vmem>>, vector<8x128xbf16>
    tpu.vector_store %arg6[%c0_4, %c0_5], %0 {strides = array<i32>} : memref<8x256xbf16, #tpu.memory_space<vmem>>, vector<8x128xbf16>,
    %c0_6 = arith.constant 0 : index
    %c128 = arith.constant 128 : index
    %21 = vector.load %arg6[%c0_6, %c128] : memref<8x256xbf16, #tpu.memory_space<vmem>>, vector<8x128xbf16>
    tpu.vector_store %arg6[%c0_6, %c128], %19 {strides = array<i32>} : memref<8x256xbf16, #tpu.memory_space<vmem>>, vector<8x128xbf16>,
    %c0_7 = arith.constant 0 : index
    %c0_8 = arith.constant 0 : index
    %22 = vector.load %arg6[%c0_7, %c0_8] : memref<8x256xbf16, #tpu.memory_space<vmem>>, vector<8x256xbf16>
    %c0_9 = arith.constant 0 : index
    %c0_10 = arith.constant 0 : index
    %23 = vector.load %arg3[%c0_9, %c0_10] : memref<256x128xbf16, #tpu.memory_space<vmem>>, vector<256x128xbf16>
    %cst_11 = arith.constant dense<0.000000e+00> : vector<8x128xf32>
    %24 = tpu.matmul %22, %23, %cst_11 {dimension_numbers = #tpu.dot_dimension_numbers<[1], [0], [0], [1], [0, 0, 1, 1], [], []>} : vector<8x256xbf16>, vector<256x128xbf16>, vector<8x128xf32> -> vector<8x128xf32>
    %c0_12 = arith.constant 0 : index
    %c0_13 = arith.constant 0 : index
    %25 = vector.load %arg4[%c0_12, %c0_13] : memref<1x128xf32, #tpu.memory_space<vmem>>, vector<1x128xf32>
    %26 = vector.broadcast %25 : vector<1x128xf32> to vector<8x128xf32>
    %27 = arith.addf %24, %26 : vector<8x128xf32>
    %c0_14 = arith.constant 0 : index
    %c0_15 = arith.constant 0 : index
    %28 = memref.load %arg1[%c0_14, %c0_15] : memref<1x1xf32, #tpu.memory_space<smem>>
    %cst_16 = arith.constant 1.000000e+00 : f32
    %29 = arith.addf %cst_16, %28 : f32
    %30 = vector.broadcast %29 : f32 to vector<8x128xf32>
    %31 = arith.mulf %27, %30 : vector<8x128xf32>
    %c0_17 = arith.constant 0 : index
    %c0_18 = arith.constant 0 : index
    %32 = vector.load %arg5[%c0_17, %c0_18] : memref<8x128xf32, #tpu.memory_space<vmem>>, vector<8x128xf32>
    tpu.vector_store %arg5[%c0_17, %c0_18], %31 {strides = array<i32>} : memref<8x128xf32, #tpu.memory_space<vmem>>, vector<8x128xf32>,
    return
  }
  func.func @transform_0(%arg0: i32) -> (i32, i32) {
    %c0_i32 = arith.constant 0 : i32
    %c0_i32_0 = arith.constant 0 : i32
    %c0_i32_1 = arith.constant 0 : i32
    return %c0_i32, %c0_i32_0 : i32, i32
  }
  func.func @transform_1(%arg0: i32) -> (i32, i32) {
    %c0_i32 = arith.constant 0 : i32
    %c0_i32_0 = arith.constant 0 : i32
    return %arg0, %c0_i32 : i32, i32
  }
  func.func @transform_2(%arg0: i32) -> (i32, i32) {
    %c0_i32 = arith.constant 0 : i32
    %c0_i32_0 = arith.constant 0 : i32
    %c0_i32_1 = arith.constant 0 : i32
    return %c0_i32, %c0_i32_0 : i32, i32
  }
  func.func @transform_3(%arg0: i32) -> (i32, i32) {
    %c0_i32 = arith.constant 0 : i32
    %c0_i32_0 = arith.constant 0 : i32
    %c0_i32_1 = arith.constant 0 : i32
    return %c0_i32, %c0_i32_0 : i32, i32
  }
  func.func @transform_4(%arg0: i32) -> (i32, i32) {
    %c0_i32 = arith.constant 0 : i32
    %c0_i32_0 = arith.constant 0 : i32
    return %arg0, %c0_i32 : i32, i32
  }
}

</mosaic_0001>

<llo_original>
// kernel: _model_pallas_impl.1
$region0: #{_model_pallas_impl.1}
  #allocation0 [shape = 'u32[]', space=smem, size = 0x4, offset = 0x4, fixed_abs, tag = 'smem constant byte address 0x4 - core index']
  #allocation1 [shape = 'u32[144,128]{1,0:T(1,128)}', space=vmem, size = 0x12000, scoped, tag = 'internal scratch']
  #allocation2 [shape = 'bf16[8,256]{1,0:T(8,128)(2,1)}', space=vmem, size = 0x1000, scoped, tag = 'scratch operand']
  #allocation3 [shape = 'f32[1,1]{1,0:T(1,128)S(6)}', space=smem, size = 0x200, scoped, tag = 'scoped memory for _model_pallas_impl.1']
  %s0 = inlined_call_operand.<no memory space> [shape: f32[1,1], index: 0, kind: input, shape index: {}]
  %s1 = inlined_call_operand.vmem [shape: bf16[16,128], index: 1, kind: input, shape index: {}]
  %s2 = inlined_call_operand.vmem [shape: bf16[256,128], index: 2, kind: input, shape index: {}]
  %s3 = inlined_call_operand.vmem [shape: f32[1,128], index: 3, kind: input, shape index: {}]
  %s4 = inlined_call_operand.vmem [shape: f32[16,128], index: 4, kind: output, shape index: {}]
  %s5 = sld [smem:[#allocation0]]
  $region49: #{_model_pallas_impl.1} parent=0
    _
  %s7 = ssub.s32 1, %s5
  %s8 = scalar_select 0, %s7, %s5
  %9 = sst [smem:[#allocation3]] %s0
  loop: start=0, step=1, limit=4
  $region2: #{_model_pallas_impl.1} parent=0 // loop_pre_header
    _
  $region3: #{_model_pallas_impl.1} parent=0 // loop_header
    %s11 = sphi 0, %s15
    %p12 = scmp.ge.s32.totalorder %s11, 4
    %s19 = sphi 0, %s19
    %s21 = sphi 0, %s19
    %s22 = sphi 0, %s21
    %s36 = sphi 0, %s22
    %s42 = sphi 0, %s44
    %s45 = sphi 0, %s42
    %s46 = sphi 0, %s45
    %s62 = sphi 0, %s46
    %s66 = sphi 0, %s66
    %s68 = sphi 0, %s66
    %s69 = sphi 0, %s68
    %s83 = sphi 0, %s69
    %s87 = sphi 0, %s87
    %s89 = sphi 0, %s87
    %s90 = sphi 0, %s89
    %s104 = sphi 0, %s90
    %s110 = sphi 0, %s112
    %s113 = sphi 0, %s110
    %s114 = sphi 0, %s113
    %s130 = sphi 0, %s114
  $region4: #{_model_pallas_impl.1} parent=0 // loop_header_branch
    %14 = sbr.rel (%p12) target = $region8
  $region5: #{_model_pallas_impl.1} parent=0 // loop_body
    %s16 = ssub.s32 %s11, 1
    %s17 = ssub.s32 %s11, 2
    %s18 = sadd.s32 %s11, 1
    %s20 = sadd.s32 %s19, 1
    %p23 = scmp.eq.s32.totalorder %s11, 1
    %p24 = scmp.ne.s32.totalorder %s19, %s21
    %p25 = scmp.eq.s32.totalorder %s11, 0
    %p26 = por %p24, %p25
    %p27 = scmp.ne.s32.totalorder %s19, %s21
    %p28 = scmp.eq.s32.totalorder %s16, 1
    %p29 = por %p27, %p28
    %p30 = scmp.ne.s32.totalorder %s21, %s22
    %p31 = scmp.eq.s32.totalorder %s16, 0
    %p32 = por %p30, %p31
    %p33 = scmp.ne.s32.totalorder %s21, %s22
    %p34 = scmp.eq.s32.totalorder %s17, 1
    %p35 = por %p33, %p34
    %p37 = scmp.ne.s32.totalorder %s22, %s36
    %p38 = scmp.eq.s32.totalorder %s17, 0
    %p39 = por %p37, %p38
    %s40 = ssub.s32 %s11, %s18
    %p41 = scmp.eq.s32.totalorder %s40, 0
    %s43 = sadd.s32 %s42, 1
    %s44 = scalar_select %p41, %s42, %s43
    %p47 = pneg %p41
    %p48 = scmp.eq.s32.totalorder %s11, 1
    %p49 = por %p47, %p48
    %p50 = scmp.ne.s32.totalorder %s42, %s45
    %p51 = scmp.eq.s32.totalorder %s11, 0
    %p52 = por %p50, %p51
    %p53 = scmp.ne.s32.totalorder %s42, %s45
    %p54 = scmp.eq.s32.totalorder %s16, 1
    %p55 = por %p53, %p54
    %p56 = scmp.ne.s32.totalorder %s45, %s46
    %p57 = scmp.eq.s32.totalorder %s16, 0
    %p58 = por %p56, %p57
    %p59 = scmp.ne.s32.totalorder %s45, %s46
    %p60 = scmp.eq.s32.totalorder %s17, 1
    %p61 = por %p59, %p60
    %p63 = scmp.ne.s32.totalorder %s46, %s62
    %p64 = scmp.eq.s32.totalorder %s17, 0
    %p65 = por %p63, %p64
    %s67 = sadd.s32 %s66, 1
    %p70 = scmp.eq.s32.totalorder %s11, 1
    %p71 = scmp.ne.s32.totalorder %s66, %s68
    %p72 = scmp.eq.s32.totalorder %s11, 0
    %p73 = por %p71, %p72
    %p74 = scmp.ne.s32.totalorder %s66, %s68
    %p75 = scmp.eq.s32.totalorder %s16, 1
    %p76 = por %p74, %p75
    %p77 = scmp.ne.s32.totalorder %s68, %s69
    %p78 = scmp.eq.s32.totalorder %s16, 0
    %p79 = por %p77, %p78
    %p80 = scmp.ne.s32.totalorder %s68, %s69
    %p81 = scmp.eq.s32.totalorder %s17, 1
    %p82 = por %p80, %p81
    %p84 = scmp.ne.s32.totalorder %s69, %s83
    %p85 = scmp.eq.s32.totalorder %s17, 0
    %p86 = por %p84, %p85
    %s88 = sadd.s32 %s87, 1
    %p91 = scmp.eq.s32.totalorder %s11, 1
    %p92 = scmp.ne.s32.totalorder %s87, %s89
    %p93 = scmp.eq.s32.totalorder %s11, 0
    %p94 = por %p92, %p93
    %p95 = scmp.ne.s32.totalorder %s87, %s89
    %p96 = scmp.eq.s32.totalorder %s16, 1
    %p97 = por %p95, %p96
    %p98 = scmp.ne.s32.totalorder %s89, %s90
    %p99 = scmp.eq.s32.totalorder %s16, 0
    %p100 = por %p98, %p99
    %p101 = scmp.ne.s32.totalorder %s89, %s90
    %p102 = scmp.eq.s32.totalorder %s17, 1
    %p103 = por %p101, %p102
    %p105 = scmp.ne.s32.totalorder %s90, %s104
    %p106 = scmp.eq.s32.totalorder %s17, 0
    %p107 = por %p105, %p106
    %s108 = ssub.s32 %s11, %s18
    %p109 = scmp.eq.s32.totalorder %s108, 0
    %s111 = sadd.s32 %s110, 1
    %s112 = scalar_select %p109, %s110, %s111
    %p115 = pneg %p109
    %p116 = scmp.eq.s32.totalorder %s11, 1
    %p117 = por %p115, %p116
    %p118 = scmp.ne.s32.totalorder %s110, %s113
    %p119 = scmp.eq.s32.totalorder %s11, 0
    %p120 = por %p118, %p119
    %p121 = scmp.ne.s32.totalorder %s110, %s113
    %p122 = scmp.eq.s32.totalorder %s16, 1
    %p123 = por %p121, %p122
    %p124 = scmp.ne.s32.totalorder %s113, %s114
    %p125 = scmp.eq.s32.totalorder %s16, 0
    %p126 = por %p124, %p125
    %p127 = scmp.ne.s32.totalorder %s113, %s114
    %p128 = scmp.eq.s32.totalorder %s17, 1
    %p129 = por %p127, %p128
    %p131 = scmp.ne.s32.totalorder %s114, %s130
    %p132 = scmp.eq.s32.totalorder %s17, 0
    %p133 = por %p131, %p132
    %p134 = scmp.le.s32.totalorder 1, %s11
    %p135 = scmp.lt.s32.totalorder %s11, 3
    %p136 = pnand %p134, %p135
    %p137 = pneg %p136
    // Predicated region
    $region9: #{_model_pallas_impl.1} parent=5 // pred_check
      _
    $region10: #{_model_pallas_impl.1} parent=5 // pred_check_branch
      %139 = sbr.rel (%p136) target = $region12
    $region11: #{_model_pallas_impl.1} parent=5 // pred_region
      %s140 = ssub.s32 %s11, 1
      // Predicated region
      $region13: #{_model_pallas_impl.1} parent=11 // pred_check
        %p141 = pneg %p32
      $region14: #{_model_pallas_impl.1} parent=11 // pred_check_branch
        %143 = sbr.rel (%p141) target = $region16
      $region15: #{_model_pallas_impl.1} parent=11 // pred_region
        _
      $region16: #{_model_pallas_impl.1} parent=11 // pred_fallthru
        _
      // Predicated region
      $region17: #{_model_pallas_impl.1} parent=11 // pred_check
        %p144 = pneg %p79
      $region18: #{_model_pallas_impl.1} parent=11 // pred_check_branch
        %146 = sbr.rel (%p144) target = $region20
      $region19: #{_model_pallas_impl.1} parent=11 // pred_region
        _
      $region20: #{_model_pallas_impl.1} parent=11 // pred_fallthru
        _
      // Predicated region
      $region21: #{_model_pallas_impl.1} parent=11 // pred_check
        %p147 = pneg %p100
      $region22: #{_model_pallas_impl.1} parent=11 // pred_check_branch
        %149 = sbr.rel (%p147) target = $region24
      $region23: #{_model_pallas_impl.1} parent=11 // pred_region
        _
      $region24: #{_model_pallas_impl.1} parent=11 // pred_fallthru
        _
    $region12: #{_model_pallas_impl.1} parent=5 // pred_fallthru
      _
    %p150 = scmp.lt.s32.totalorder %s11, 2
    // Predicated region
    $region25: #{_model_pallas_impl.1} parent=5 // pred_check
      %p151 = pneg %p150
    $region26: #{_model_pallas_impl.1} parent=5 // pred_check_branch
      %153 = sbr.rel (%p151) target = $region28
    $region27: #{_model_pallas_impl.1} parent=5 // pred_region
      // Predicated region
      $region29: #{_model_pallas_impl.1} parent=27 // pred_check
        %p154 = pneg %p52
      $region30: #{_model_pallas_impl.1} parent=27 // pred_check_branch
        %156 = sbr.rel (%p154) target = $region32
      $region31: #{_model_pallas_impl.1} parent=27 // pred_region
        %p157 = scmp.lt.s32.totalorder %s11, 1
        %s158 = scalar_select %p157, %s11, 1
        %s159 = smul.addr %s158, 4
        %s160 = scalar_lea.vmem %s1, %s159
      $region32: #{_model_pallas_impl.1} parent=27 // pred_fallthru
        _
    $region28: #{_model_pallas_impl.1} parent=5 // pred_fallthru
      _
    %p161 = scmp.le.s32.totalorder 1, %s11
    %p162 = scmp.lt.s32.totalorder %s11, 3
    %p163 = pnand %p161, %p162
    %p164 = pneg %p163
    // Predicated region
    $region33: #{_model_pallas_impl.1} parent=5 // pred_check
      _
    $region34: #{_model_pallas_impl.1} parent=5 // pred_check_branch
      %166 = sbr.rel (%p163) target = $region36
    $region35: #{_model_pallas_impl.1} parent=5 // pred_region
      %s167 = ssub.s32 %s11, 1
      %p168 = pneg %p32
      %p169 = pneg %p29
      %p170 = scmp.lt.s32.totalorder %s16, 1
      %s171 = scalar_select %p170, %s16, 1
      %s172 = smul.addr %s171, 4
      %s173 = scalar_lea.vmem %s1, %s172
      %p174 = pneg %p58
      %p175 = pneg %p55
      %p176 = pneg %p79
      %p177 = pneg %p76
      %p178 = pneg %p100
      %p179 = pneg %p97
      %p180 = pneg %p126
      %p181 = pneg %p123
      %p182 = scmp.lt.s32.totalorder %s16, 1
      %s183 = scalar_select %p182, %s16, 1
      %s184 = smul.addr %s183, 8
      %s185 = scalar_lea.vmem %s4, %s184
      %p186 = scmp.lt.s32.totalorder %s16, 1
      %s187 = scalar_select %p186, %s16, 1
      %s188 = smul.addr %s187, 4
      %s189 = scalar_lea.vmem %s1, %s188
      %p190 = scmp.lt.s32.totalorder %s16, 1
      %s191 = scalar_select %p190, %s16, 1
      %s192 = smul.addr %s191, 8
      %s193 = scalar_lea.vmem %s4, %s192
      %v195 = vld [vmem:[%s189] sm:$0xf]
      %v196 = vunpack.c.l.bf16 %v195
      %v197 = vrot.slane %v196, 1
      %v198 = vrot.slane %v196, 7
      %v199 = vlaneseq
      %v200 = vshrl.u32 %v199, 7
      %v201 = vand.u32 %v200, 7
      %v202 = vlaneseq
      %v203 = vand.u32 %v202, 127
      %vm204 = vcmp.eq.s32.totalorder %v201, 7
      %v205 = vsel %vm204, 0.0, %v197
      %vm206 = vcmp.eq.s32.totalorder %v201, 0
      %v207 = vsel %vm206, 0.0, %v198
      %vm208 = vcmp.lt.s32.totalorder %v203, 64
      %v209 = vsel %vm208, %v205, %v207
      %v210 = vpack.c.bf16 %v209, %v209
      %211 = vst [vmem:[#allocation2] sm:$0xf] %v195
      %212 = vst [vmem:[#allocation2 + $0x4] sm:$0xf] %v210
      %v213 = vld [vmem:[#allocation2] sm:$0xff]
      %v214 = vld [vmem:[%s2] sm:$0xf]
      %v215 = vld [vmem:[%s2 + $0x4] sm:$0xf]
      %v216 = vld [vmem:[%s2 + $0x8] sm:$0xf]
      %v217 = vld [vmem:[%s2 + $0xc] sm:$0xf]
      %v218 = vld [vmem:[%s2 + $0x10] sm:$0xf]
      %v219 = vld [vmem:[%s2 + $0x14] sm:$0xf]
      %v220 = vld [vmem:[%s2 + $0x18] sm:$0xf]
      %v221 = vld [vmem:[%s2 + $0x1c] sm:$0xf]
      %v222 = vld [vmem:[%s2 + $0x20] sm:$0xf]
      %v223 = vld [vmem:[%s2 + $0x24] sm:$0xf]
      %v224 = vld [vmem:[%s2 + $0x28] sm:$0xf]
      %v225 = vld [vmem:[%s2 + $0x2c] sm:$0xf]
      %v226 = vld [vmem:[%s2 + $0x30] sm:$0xf]
      %v227 = vld [vmem:[%s2 + $0x34] sm:$0xf]
      %v228 = vld [vmem:[%s2 + $0x38] sm:$0xf]
      %v229 = vld [vmem:[%s2 + $0x3c] sm:$0xf]
      %v230 = vld [vmem:[%s2 + $0x40] sm:$0xf]
      %v231 = vld [vmem:[%s2 + $0x44] sm:$0xf]
      %v232 = vld [vmem:[%s2 + $0x48] sm:$0xf]
      %v233 = vld [vmem:[%s2 + $0x4c] sm:$0xf]
      %v234 = vld [vmem:[%s2 + $0x50] sm:$0xf]
      %v235 = vld [vmem:[%s2 + $0x54] sm:$0xf]
      %v236 = vld [vmem:[%s2 + $0x58] sm:$0xf]
      %v237 = vld [vmem:[%s2 + $0x5c] sm:$0xf]
      %v238 = vld [vmem:[%s2 + $0x60] sm:$0xf]
      %v239 = vld [vmem:[%s2 + $0x64] sm:$0xf]
      %v240 = vld [vmem:[%s2 + $0x68] sm:$0xf]
      %v241 = vld [vmem:[%s2 + $0x6c] sm:$0xf]
      %v242 = vld [vmem:[%s2 + $0x70] sm:$0xf]
      %v243 = vld [vmem:[%s2 + $0x74] sm:$0xf]
      %v244 = vld [vmem:[%s2 + $0x78] sm:$0xf]
      %v245 = vld [vmem:[%s2 + $0x7c] sm:$0xf]
      %v246 = vld [vmem:[%s3] sm:$0x1]
      %v248 = vlaneseq
      %v249 = vshrl.u32 %v248, 7
      %v250 = vsub.s32 0, %v249
      %v251 = vrot.slane %v246, %v250
      %v254 = vunpack.c.l.b16 %v213
      %v255 = vunpack.c.h.b16 %v213
      %v256 = vpack.c.b16 %v254, %v254
      %v257 = vpack.c.b16 %v255, %v255
      %v292 = vunpack.c.l.b16 %v214
      %v293 = vunpack.c.l.b16 %v215
      %v294 = vunpack.c.l.b16 %v216
      %v295 = vunpack.c.l.b16 %v217
      %v296 = vunpack.c.l.b16 %v218
      %v297 = vunpack.c.l.b16 %v219
      %v298 = vunpack.c.l.b16 %v220
      %v299 = vunpack.c.l.b16 %v221
      %v300 = vunpack.c.l.b16 %v222
      %v301 = vunpack.c.l.b16 %v223
      %v302 = vunpack.c.l.b16 %v224
      %v303 = vunpack.c.l.b16 %v225
      %v304 = vunpack.c.l.b16 %v226
      %v305 = vunpack.c.l.b16 %v227
      %v306 = vunpack.c.l.b16 %v228
      %v307 = vunpack.c.l.b16 %v229
      %v308 = vunpack.c.l.b16 %v230
      %v309 = vunpack.c.l.b16 %v231
      %v310 = vunpack.c.l.b16 %v232
      %v311 = vunpack.c.l.b16 %v233
      %v312 = vunpack.c.l.b16 %v234
      %v313 = vunpack.c.l.b16 %v235
      %v314 = vunpack.c.l.b16 %v236
      %v315 = vunpack.c.l.b16 %v237
      %v316 = vunpack.c.l.b16 %v238
      %v317 = vunpack.c.l.b16 %v239
      %v318 = vunpack.c.l.b16 %v240
      %v319 = vunpack.c.l.b16 %v241
      %v320 = vunpack.c.l.b16 %v242
      %v321 = vunpack.c.l.b16 %v243
      %v322 = vunpack.c.l.b16 %v244
      %v323 = vunpack.c.l.b16 %v245
      %v324 = vpack.c.b16 %v293, %v292
      %v325 = vpack.c.b16 %v295, %v294
      %v326 = vpack.c.b16 %v297, %v296
      %v327 = vpack.c.b16 %v299, %v298
      %v328 = vpack.c.b16 %v301, %v300
      %v329 = vpack.c.b16 %v303, %v302
      %v330 = vpack.c.b16 %v305, %v304
      %v331 = vpack.c.b16 %v307, %v306
      %v332 = vpack.c.b16 %v309, %v308
      %v333 = vpack.c.b16 %v311, %v310
      %v334 = vpack.c.b16 %v313, %v312
      %v335 = vpack.c.b16 %v315, %v314
      %v336 = vpack.c.b16 %v317, %v316
      %v337 = vpack.c.b16 %v319, %v318
      %v338 = vpack.c.b16 %v321, %v320
      %v339 = vpack.c.b16 %v323, %v322
      %356 = vmatprep.subr.bf16.mxu0 0
      %357 = vmatpush1.bf16.msra.mxu0 %v324
      %358 = vmatprep.subr.bf16.mxu0 0
      %359 = vmatpush1.bf16.msra.mxu0 %v325
      %360 = vmatprep.subr.bf16.mxu0 0
      %361 = vmatpush1.bf16.msra.mxu0 %v326
      %362 = vmatprep.subr.bf16.mxu0 0
      %363 = vmatpush1.bf16.msra.mxu0 %v327
      %364 = vmatprep.subr.bf16.mxu0 0
      %365 = vmatpush1.bf16.msra.mxu0 %v328
      %366 = vmatprep.subr.bf16.mxu0 0
      %367 = vmatpush1.bf16.msra.mxu0 %v329
      %368 = vmatprep.subr.bf16.mxu0 0
      %369 = vmatpush1.bf16.msra.mxu0 %v330
      %370 = vmatprep.subr.bf16.mxu0 0
      %371 = vmatpush1.bf16.msra.mxu0 %v331
      %372 = vmatprep.subr.bf16.mxu0 0
      %373 = vmatpush1.bf16.msra.mxu0 %v332
      %374 = vmatprep.subr.bf16.mxu0 0
      %375 = vmatpush1.bf16.msra.mxu0 %v333
      %376 = vmatprep.subr.bf16.mxu0 0
      %377 = vmatpush1.bf16.msra.mxu0 %v334
      %378 = vmatprep.subr.bf16.mxu0 0
      %379 = vmatpush1.bf16.msra.mxu0 %v335
      %380 = vmatprep.subr.bf16.mxu0 0
      %381 = vmatpush1.bf16.msra.mxu0 %v336
      %382 = vmatprep.subr.bf16.mxu0 0
      %383 = vmatpush1.bf16.msra.mxu0 %v337
      %384 = vmatprep.subr.bf16.mxu0 0
      %385 = vmatpush1.bf16.msra.mxu0 %v338
      %386 = vmatprep.subr.bf16.mxu0 0
      %387 = vmatpush1.bf16.msra.mxu0 %v339
      %388 = vmatprep.mubr.bf16.mxu0 %v257
      %389 = vmatmul.mubr.bf16.gmra.mrb[0].mxu0 %v256
      %v390 = vpop.f32.mrb[0].mxu0
      %v391 = vadd.f32 %v251, %v390
      %v392 = vpop.f32.mrb[0].mxu0
      %v393 = vpop.f32.mrb[0].mxu0
      %v394 = vpop.f32.mrb[0].mxu0
      %395 = vdwg.mxu0
      %s396 = sld [smem:[#allocation3]]
      %s397 = sadd.f32 %s396, 1.0
      %v398 = vstv %s397
      %v399 = vmul.f32 %v391, %v398
      %400 = vst [vmem:[%s193] sm:$0xff] %v399
      %p401 = scmp.lt.s32.totalorder %s16, 1
      %s402 = scalar_select %p401, %s16, 1
      %s403 = smul.addr %s402, 8
      %s404 = scalar_lea.vmem %s4, %s403
      // Predicated region
      $region37: #{_model_pallas_impl.1} parent=35 // pred_check
        %p405 = pneg %p123
      $region38: #{_model_pallas_impl.1} parent=35 // pred_check_branch
        %407 = sbr.rel (%p405) target = $region40
      $region39: #{_model_pallas_impl.1} parent=35 // pred_region
        _
      $region40: #{_model_pallas_impl.1} parent=35 // pred_fallthru
        _
    $region36: #{_model_pallas_impl.1} parent=5 // pred_fallthru
      _
    %p408 = scmp.le.s32.totalorder 2, %s11
    // Predicated region
    $region41: #{_model_pallas_impl.1} parent=5 // pred_check
      %p409 = pneg %p408
    $region42: #{_model_pallas_impl.1} parent=5 // pred_check_branch
      %411 = sbr.rel (%p409) target = $region44
    $region43: #{_model_pallas_impl.1} parent=5 // pred_region
      %s412 = ssub.s32 %s11, 2
      // Predicated region
      $region45: #{_model_pallas_impl.1} parent=43 // pred_check
        %p413 = pneg %p129
      $region46: #{_model_pallas_impl.1} parent=43 // pred_check_branch
        %415 = sbr.rel (%p413) target = $region48
      $region47: #{_model_pallas_impl.1} parent=43 // pred_region
        %p416 = scmp.lt.s32.totalorder %s17, 1
        %s417 = scalar_select %p416, %s17, 1
        %s418 = smul.addr %s417, 8
        %s419 = scalar_lea.vmem %s4, %s418
      $region48: #{_model_pallas_impl.1} parent=43 // pred_fallthru
        _
    $region44: #{_model_pallas_impl.1} parent=5 // pred_fallthru
      _
  $region6: #{_model_pallas_impl.1} parent=0 // loop_footer
    %s15 = sadd.s32 1, %s11
  $region7: #{_model_pallas_impl.1} parent=0 // loop_footer_branch
    %10 = sbr.rel target = $region3
  $region8: #{_model_pallas_impl.1} parent=0 // loop_exit
    _

</llo_original>
